<compile_context>
chip_gen: v6e
topology: v6e:2x2x1
jax: 0.10.0
libtpu: 0.0.40
codegen_flags: <defaults>
</compile_context>

<pallas_src>
import functools

import jax
import jax.numpy as jnp
from jax.experimental import pallas as pl
from jax.experimental.pallas import tpu as pltpu


def _round_up(v, m):
    return ((v + m - 1) // m) * m


def _pad_to(arr, shape):
    pads = [(0, t - s) for s, t in zip(arr.shape, shape)]
    if all(p == (0, 0) for p in pads):
        return arr
    return jnp.pad(arr, pads)


@functools.lru_cache(maxsize=1)
def _num_tensorcores():
    """2 on v7x (two TCs share the 'parallel' grid axis), else 1."""
    try:
        kind = jax.devices()[0].device_kind.lower()
        if "v7" in kind:
            return 2
    except Exception:
        pass
    return 1


@functools.lru_cache(maxsize=1)
def _vmem_capacity_bytes():
    """Physical per-core VMEM; conservative 64 MiB fallback (v7x)."""
    try:
        return int(pltpu.get_tpu_info().vmem_capacity_bytes)
    except Exception:
        return 64 << 20


@functools.lru_cache(maxsize=1)
def _buffered1_supported():
    """One-time probe: does this Pallas accept pipeline_mode=pl.Buffered(1)?

    The probe kernel is trivially correct, so any failure here means Buffered(1)
    itself is unsupported on this version — the real launch below has no
    blanket except that could mask genuine errors.
    """
    try:
        const_spec = pl.BlockSpec((8, 128), lambda i: (0, 0),
                                  pipeline_mode=pl.Buffered(1))

        def _probe_kernel(a_ref, c_ref, o_ref):
            o_ref[...] = a_ref[...] + c_ref[...]

        fn = pl.pallas_call(
            _probe_kernel,
            out_shape=jax.ShapeDtypeStruct((16, 128), jnp.float32),
            grid_spec=pltpu.PrefetchScalarGridSpec(
                num_scalar_prefetch=0,
                grid=(2,),
                in_specs=[pl.BlockSpec((8, 128), lambda i: (i, 0)), const_spec],
                out_specs=pl.BlockSpec((8, 128), lambda i: (i, 0)),
            ),
        )
        out = jax.block_until_ready(
            fn(jnp.zeros((16, 128), jnp.float32), jnp.ones((8, 128), jnp.float32)))
        return bool(jnp.all(out == 1.0))
    except Exception:
        return False


def _choose_tiling(m, num_cores, cap=512):
    """Return (tm, mp): row tile and padded row count (mp == tm * n_steps)."""
    m8 = _round_up(max(m, 1), 8)
    if num_cores <= 1 and m8 <= cap:
        return m8, m8                                   # single step, no split
    n_steps = max(1, pl.cdiv(m8, cap))
    if num_cores > 1:
        n_steps = _round_up(max(n_steps, num_cores), num_cores)
    quantum = 128 if m8 >= 128 * n_steps else 8         # 128-mult tiles when big
    tm = min(_round_up(pl.cdiv(m8, n_steps), quantum), cap)
    if tm * n_steps < m8:                               # tm hit the cap
        n_steps = pl.cdiv(m8, tm)
        if num_cores > 1:
            n_steps = _round_up(n_steps, num_cores)
    return tm, tm * n_steps


def prepare_params(params, *, compute_dtype=None):
    """Cast + zero-pad the head weights ONCE (call outside the hot loop).

    compute_dtype: dtype fed to the MXU. jnp.bfloat16 is recommended on
    v5e/v6e/v7x (f32 accumulation in-kernel keeps accuracy); defaults to bf16
    automatically for hidden >= 1280 so f32 weights never blow v7x VMEM.
    """
    w1, b1, w2, b2, w3 = (params["w1"], params["b1"], params["w2"],
                          params["b2"], params["w3"])
    hidden = w1.shape[0]
    num_labels = w3.shape[1]
    if compute_dtype is None:
        compute_dtype = jnp.bfloat16 if hidden >= 1280 else w1.dtype
    compute_dtype = jnp.dtype(compute_dtype)

    hp = _round_up(hidden, 128)
    h2p = _round_up(2 * hidden, 128)
    lp = _round_up(num_labels, 128)      # lane-dense output store

    return {
        "w1p": _pad_to(w1.astype(compute_dtype), (hp, h2p)),
        "b1p": _pad_to(b1.reshape(1, -1).astype(compute_dtype), (1, h2p)),
        "w2p": _pad_to(w2.astype(compute_dtype), (h2p, hp)),
        "b2p": _pad_to(b2.reshape(1, -1).astype(compute_dtype), (1, hp)),
        "w3p": _pad_to(w3.astype(compute_dtype), (hp, lp)),
        "hidden": hidden,
        "num_labels": num_labels,
        "hp": hp,
        "h2p": h2p,
        "lp": lp,
        "compute_dtype": compute_dtype,
    }


def _head_kernel(x_ref, w1_ref, b1_ref, w2_ref, b2_ref, w3_ref, o_ref):
    # x_ref: (tm, Hp), w1_ref: (Hp, H2p), b1_ref: (1, H2p),
    # w2_ref: (H2p, Hp), b2_ref: (1, Hp), w3_ref: (Hp, Lp), o_ref: (tm, Lp)
    x = x_ref[...]

    h1 = jnp.dot(x, w1_ref[...], preferred_element_type=jnp.float32) + b1_ref[...]
    h1 = jnp.maximum(h1, 0.0).astype(w2_ref.dtype)          # relu (VPU)
    # TODO(synk): nn.Dropout(resid_pdrop) is identity in eval mode; not applied.

    h2 = jnp.dot(h1, w2_ref[...], preferred_element_type=jnp.float32) + b2_ref[...]
    h2 = jnp.maximum(h2, 0.0).astype(w3_ref.dtype)          # relu (VPU)

    out = jnp.dot(h2, w3_ref[...], preferred_element_type=jnp.float32)
    o_ref[...] = out.astype(o_ref.dtype)


def gpt2_classification_head(x, params, *, tm=None, compute_dtype=None):
    """x: (..., hidden). Returns (..., num_labels).

    `params` should preferably be the cached output of prepare_params(); raw
    {w1,b1,w2,b2,w3} is accepted but re-pads weights on every call.
    """
    if "w1p" not in params:
        params = prepare_params(params, compute_dtype=compute_dtype)

    hidden, num_labels = params["hidden"], params["num_labels"]
    hp, h2p, lp = params["hp"], params["h2p"], params["lp"]
    compute_dtype = params["compute_dtype"]
    assert x.shape[-1] == hidden
    out_dtype = x.dtype

    lead_shape = x.shape[:-1]
    x2d = x.reshape(-1, hidden).astype(compute_dtype)
    m = x2d.shape[0]

    num_cores = _num_tensorcores()
    if tm is None:
        tm, mp = _choose_tiling(m, num_cores)
    else:
        tm = _round_up(max(tm, 8), 8)
        mp = _round_up(m, tm)
    x2d = _pad_to(x2d, (mp, hp))

    buffered1 = _buffered1_supported()
    weight_pipeline = pl.Buffered(1) if buffered1 else None

    def const_spec(shape):
        # Constant-index weight blocks never change across grid steps:
        # single-buffer them (when supported) to halve their VMEM footprint.
        if weight_pipeline is None:
            return pl.BlockSpec(shape, lambda i: (0, 0))
        return pl.BlockSpec(shape, lambda i: (0, 0), pipeline_mode=weight_pipeline)

    # --- explicit VMEM budget, capped by physical per-core VMEM --------------
    cb = compute_dtype.itemsize
    ob = jnp.dtype(out_dtype).itemsize
    weight_bufs = 1 if buffered1 else 2
    weight_bytes = (hp * h2p + h2p * hp + hp * lp + h2p + hp) * cb
    stream_bytes = 2 * tm * hp * cb + 2 * tm * lp * ob        # double-buffered io
    interm_bytes = tm * (h2p + hp + lp) * 4                   # f32 temporaries
    needed = weight_bufs * weight_bytes + stream_bytes + interm_bytes
    vmem_limit = min(max(int(1.25 * needed) + (4 << 20), 32 << 20),
                     _vmem_capacity_bytes())
    # TODO(synk): only if f32 GPT2-XL weights must stay resident on v7x (64 MiB
    # VMEM): add a K-chunked reduction grid axis (last, "arbitrary", pl.when
    # init/finalize). With bf16 + Buffered(1) even XL weights fit, so not added.

    out2d = pl.pallas_call(
        _head_kernel,
        out_shape=jax.ShapeDtypeStruct((mp, lp), out_dtype),
        grid_spec=pltpu.PrefetchScalarGridSpec(
            num_scalar_prefetch=0,
            grid=(mp // tm,),
            in_specs=[
                pl.BlockSpec((tm, hp), lambda i: (i, 0)),   # streamed x rows
                const_spec((hp, h2p)),                      # W1 (resident)
                const_spec((1, h2p)),                       # b1
                const_spec((h2p, hp)),                      # W2
                const_spec((1, hp)),                        # b2
                const_spec((hp, lp)),                       # W3
            ],
            out_specs=pl.BlockSpec((tm, lp), lambda i: (i, 0)),
        ),
        compiler_params=pltpu.CompilerParams(
            dimension_semantics=("parallel",),
            vmem_limit_bytes=vmem_limit,
        ),
    )(x2d, params["w1p"], params["b1p"], params["w2p"], params["b2p"],
      params["w3p"])

    out2d = out2d[:m, :num_labels]
    return out2d.reshape(*lead_shape, num_labels)


def init_params(key, hidden, num_labels, dtype=jnp.float32):
    """Deterministic synthetic parameters, stored pre-transposed as (in, out)."""
    k1, k2, k3, k4, k5 = jax.random.split(key, 5)
    scale1 = 1.0 / jnp.sqrt(hidden)
    scale2 = 1.0 / jnp.sqrt(2 * hidden)
    return {
        # dense_1: Linear(hidden, 2*hidden)  -> W1^T shape (hidden, 2*hidden)
        "w1": (jax.random.normal(k1, (hidden, 2 * hidden)) * scale1).astype(dtype),
        "b1": (jax.random.normal(k2, (2 * hidden,)) * scale1).astype(dtype),
        # dense_2: Linear(2*hidden, hidden)  -> W2^T shape (2*hidden, hidden)
        "w2": (jax.random.normal(k3, (2 * hidden, hidden)) * scale2).astype(dtype),
        "b2": (jax.random.normal(k4, (hidden,)) * scale2).astype(dtype),
        # out_proj: Linear(hidden, num_labels, bias=False) -> W3^T (hidden, L)
        "w3": (jax.random.normal(k5, (hidden, num_labels)) * scale1).astype(dtype),
    }


if __name__ == "__main__":
    batch, seq, hidden, num_labels = 2, 8, 32, 4

    key = jax.random.PRNGKey(0)
    kx, kp = jax.random.split(key)
    x = jax.random.normal(kx, (batch, seq, hidden), dtype=jnp.float32)
    raw = init_params(kp, hidden, num_labels)

    # Pure-JAX reference (eval mode: dropout = identity).
    h1 = jnp.maximum(x @ raw["w1"] + raw["b1"], 0.0)
    h2 = jnp.maximum(h1 @ raw["w2"] + raw["b2"], 0.0)
    ref = h2 @ raw["w3"]

    # f32 path: weights prepared once, exact check.
    prepared_f32 = prepare_params(raw, compute_dtype=jnp.float32)
    out = jax.block_until_ready(gpt2_classification_head(x, prepared_f32))
    assert out.shape == (batch, seq, num_labels)
    assert jnp.allclose(out, ref, atol=1e-5, rtol=1e-5)

    # bf16 MXU-feed path (recommended on v5e/v6e/v7x) — loose-tolerance check.
    prepared_bf16 = prepare_params(raw, compute_dtype=jnp.bfloat16)
    out_bf16 = jax.block_until_ready(gpt2_classification_head(x, prepared_bf16))
    assert out_bf16.shape == (batch, seq, num_labels)
    assert bool(jnp.all(jnp.isfinite(out_bf16)))
    assert jnp.allclose(out_bf16, ref, atol=1e-1, rtol=1e-1)

    print("KERNEL_OK")
</pallas_src>

<mosaic_0001>
module attributes {stable_mosaic.version = 11 : i64} {
  func.func @_probe_kernel(%arg0: i32, %arg1: memref<8x128xf32, #tpu.memory_space<vmem>>, %arg2: memref<8x128xf32, #tpu.memory_space<vmem>>, %arg3: memref<8x128xf32, #tpu.memory_space<vmem>>) attributes {dimension_semantics = [#tpu.dimension_semantics<arbitrary>], iteration_bounds = array<i64: 2>, scalar_prefetch = 0 : i64, scratch_operands = 0 : i64, tpu.core_type = #tpu.core_type<tc>, window_params = [{transform_indices = @transform_0, window_bounds = array<i64: 8, 128>}, {pipeline_mode = #tpu.pipeline_mode<synchronous>, transform_indices = @transform_1, window_bounds = array<i64: 8, 128>}, {transform_indices = @transform_2, window_bounds = array<i64: 8, 128>}]} {
    %c0 = arith.constant 0 : index
    %c0_0 = arith.constant 0 : index
    %0 = vector.load %arg1[%c0, %c0_0] : memref<8x128xf32, #tpu.memory_space<vmem>>, vector<8x128xf32>
    %c0_1 = arith.constant 0 : index
    %c0_2 = arith.constant 0 : index
    %1 = vector.load %arg2[%c0_1, %c0_2] : memref<8x128xf32, #tpu.memory_space<vmem>>, vector<8x128xf32>
    %2 = arith.addf %0, %1 : vector<8x128xf32>
    %c0_3 = arith.constant 0 : index
    %c0_4 = arith.constant 0 : index
    %3 = vector.load %arg3[%c0_3, %c0_4] : memref<8x128xf32, #tpu.memory_space<vmem>>, vector<8x128xf32>
    tpu.vector_store %arg3[%c0_3, %c0_4], %2 {strides = array<i32>} : memref<8x128xf32, #tpu.memory_space<vmem>>, vector<8x128xf32>,
    return
  }
  func.func @transform_0(%arg0: i32) -> (i32, i32) {
    %c0_i32 = arith.constant 0 : i32
    %c0_i32_0 = arith.constant 0 : i32
    return %arg0, %c0_i32 : i32, i32
  }
  func.func @transform_1(%arg0: i32) -> (i32, i32) {
    %c0_i32 = arith.constant 0 : i32
    %c0_i32_0 = arith.constant 0 : i32
    %c0_i32_1 = arith.constant 0 : i32
    return %c0_i32, %c0_i32_0 : i32, i32
  }
  func.func @transform_2(%arg0: i32) -> (i32, i32) {
    %c0_i32 = arith.constant 0 : i32
    %c0_i32_0 = arith.constant 0 : i32
    return %arg0, %c0_i32 : i32, i32
  }
}

module attributes {stable_mosaic.version = 11 : i64} {
  func.func @_head_kernel(%arg0: i32, %arg1: memref<16x128xf32, #tpu.memory_space<vmem>>, %arg2: memref<128x128xf32, #tpu.memory_space<vmem>>, %arg3: memref<1x128xf32, #tpu.memory_space<vmem>>, %arg4: memref<128x128xf32, #tpu.memory_space<vmem>>, %arg5: memref<1x128xf32, #tpu.memory_space<vmem>>, %arg6: memref<128x128xf32, #tpu.memory_space<vmem>>, %arg7: memref<16x128xf32, #tpu.memory_space<vmem>>) attributes {dimension_semantics = [#tpu.dimension_semantics<parallel>], iteration_bounds = array<i64: 1>, scalar_prefetch = 0 : i64, scratch_operands = 0 : i64, tpu.core_type = #tpu.core_type<tc>, window_params = [{transform_indices = @transform_0, window_bounds = array<i64: 16, 128>}, {pipeline_mode = #tpu.pipeline_mode<synchronous>, transform_indices = @transform_1, window_bounds = array<i64: 128, 128>}, {pipeline_mode = #tpu.pipeline_mode<synchronous>, transform_indices = @transform_2, window_bounds = array<i64: 1, 128>}, {pipeline_mode = #tpu.pipeline_mode<synchronous>, transform_indices = @transform_3, window_bounds = array<i64: 128, 128>}, {pipeline_mode = #tpu.pipeline_mode<synchronous>, transform_indices = @transform_4, window_bounds = array<i64: 1, 128>}, {pipeline_mode = #tpu.pipeline_mode<synchronous>, transform_indices = @transform_5, window_bounds = array<i64: 128, 128>}, {transform_indices = @transform_6, window_bounds = array<i64: 16, 128>}]} {
    %c0 = arith.constant 0 : index
    %c0_0 = arith.constant 0 : index
    %0 = vector.load %arg1[%c0, %c0_0] : memref<16x128xf32, #tpu.memory_space<vmem>>, vector<16x128xf32>
    %c0_1 = arith.constant 0 : index
    %c0_2 = arith.constant 0 : index
    %1 = vector.load %arg2[%c0_1, %c0_2] : memref<128x128xf32, #tpu.memory_space<vmem>>, vector<128x128xf32>
    %cst = arith.constant dense<0.000000e+00> : vector<16x128xf32>
    %2 = tpu.matmul %0, %1, %cst {dimension_numbers = #tpu.dot_dimension_numbers<[1], [0], [0], [1], [0, 0, 1, 1], [], []>} : vector<16x128xf32>, vector<128x128xf32>, vector<16x128xf32> -> vector<16x128xf32>
    %c0_3 = arith.constant 0 : index
    %c0_4 = arith.constant 0 : index
    %3 = vector.load %arg3[%c0_3, %c0_4] : memref<1x128xf32, #tpu.memory_space<vmem>>, vector<1x128xf32>
    %4 = vector.broadcast %3 : vector<1x128xf32> to vector<16x128xf32>
    %5 = arith.addf %2, %4 : vector<16x128xf32>
    %cst_5 = arith.constant 0.000000e+00 : f32
    %6 = vector.broadcast %cst_5 : f32 to vector<16x128xf32>
    %7 = arith.maximumf %5, %6 : vector<16x128xf32>
    %c0_6 = arith.constant 0 : index
    %c0_7 = arith.constant 0 : index
    %8 = vector.load %arg4[%c0_6, %c0_7] : memref<128x128xf32, #tpu.memory_space<vmem>>, vector<128x128xf32>
    %cst_8 = arith.constant dense<0.000000e+00> : vector<16x128xf32>
    %9 = tpu.matmul %7, %8, %cst_8 {dimension_numbers = #tpu.dot_dimension_numbers<[1], [0], [0], [1], [0, 0, 1, 1], [], []>} : vector<16x128xf32>, vector<128x128xf32>, vector<16x128xf32> -> vector<16x128xf32>
    %c0_9 = arith.constant 0 : index
    %c0_10 = arith.constant 0 : index
    %10 = vector.load %arg5[%c0_9, %c0_10] : memref<1x128xf32, #tpu.memory_space<vmem>>, vector<1x128xf32>
    %11 = vector.broadcast %10 : vector<1x128xf32> to vector<16x128xf32>
    %12 = arith.addf %9, %11 : vector<16x128xf32>
    %cst_11 = arith.constant 0.000000e+00 : f32
    %13 = vector.broadcast %cst_11 : f32 to vector<16x128xf32>
    %14 = arith.maximumf %12, %13 : vector<16x128xf32>
    %c0_12 = arith.constant 0 : index
    %c0_13 = arith.constant 0 : index
    %15 = vector.load %arg6[%c0_12, %c0_13] : memref<128x128xf32, #tpu.memory_space<vmem>>, vector<128x128xf32>
    %cst_14 = arith.constant dense<0.000000e+00> : vector<16x128xf32>
    %16 = tpu.matmul %14, %15, %cst_14 {dimension_numbers = #tpu.dot_dimension_numbers<[1], [0], [0], [1], [0, 0, 1, 1], [], []>} : vector<16x128xf32>, vector<128x128xf32>, vector<16x128xf32> -> vector<16x128xf32>
    %c0_15 = arith.constant 0 : index
    %c0_16 = arith.constant 0 : index
    %17 = vector.load %arg7[%c0_15, %c0_16] : memref<16x128xf32, #tpu.memory_space<vmem>>, vector<16x128xf32>
    tpu.vector_store %arg7[%c0_15, %c0_16], %16 {strides = array<i32>} : memref<16x128xf32, #tpu.memory_space<vmem>>, vector<16x128xf32>,
    return
  }
  func.func @transform_0(%arg0: i32) -> (i32, i32) {
    %c0_i32 = arith.constant 0 : i32
    %c0_i32_0 = arith.constant 0 : i32
    return %arg0, %c0_i32 : i32, i32
  }
  func.func @transform_1(%arg0: i32) -> (i32, i32) {
    %c0_i32 = arith.constant 0 : i32
    %c0_i32_0 = arith.constant 0 : i32
    %c0_i32_1 = arith.constant 0 : i32
    return %c0_i32, %c0_i32_0 : i32, i32
  }
  func.func @transform_2(%arg0: i32) -> (i32, i32) {
    %c0_i32 = arith.constant 0 : i32
    %c0_i32_0 = arith.constant 0 : i32
    %c0_i32_1 = arith.constant 0 : i32
    return %c0_i32, %c0_i32_0 : i32, i32
  }
  func.func @transform_3(%arg0: i32) -> (i32, i32) {
    %c0_i32 = arith.constant 0 : i32
    %c0_i32_0 = arith.constant 0 : i32
    %c0_i32_1 = arith.constant 0 : i32
    return %c0_i32, %c0_i32_0 : i32, i32
  }
  func.func @transform_4(%arg0: i32) -> (i32, i32) {
    %c0_i32 = arith.constant 0 : i32
    %c0_i32_0 = arith.constant 0 : i32
    %c0_i32_1 = arith.constant 0 : i32
    return %c0_i32, %c0_i32_0 : i32, i32
  }
  func.func @transform_5(%arg0: i32) -> (i32, i32) {
    %c0_i32 = arith.constant 0 : i32
    %c0_i32_0 = arith.constant 0 : i32
    %c0_i32_1 = arith.constant 0 : i32
    return %c0_i32, %c0_i32_0 : i32, i32
  }
  func.func @transform_6(%arg0: i32) -> (i32, i32) {
    %c0_i32 = arith.constant 0 : i32
    %c0_i32_0 = arith.constant 0 : i32
    return %arg0, %c0_i32 : i32, i32
  }
}

</mosaic_0001>

<llo_original>
// kernel: tpu_custom_call.1
$region0: #{tpu_custom_call.1}
  #allocation0 [shape = 'u32[]', space=smem, size = 0x4, offset = 0x4, fixed_abs, tag = 'smem constant byte address 0x4 - core index']
  #allocation1 [shape = 'u32[144,128]{1,0:T(1,128)}', space=vmem, size = 0x12000, scoped, tag = 'internal scratch']
  %s0 = inlined_call_operand.hbm [shape: f32[16,128], index: 0, kind: input, shape index: {}]
  %s1 = inlined_call_operand.hbm [shape: f32[8,128], index: 1, kind: input, shape index: {}]
  %s2 = inlined_call_operand.hbm [shape: f32[16,128], index: 2, kind: output, shape index: {}]
  %s3 = sld [smem:[#allocation0]]
  $region49: #{tpu_custom_call.1} parent=0
    _
  %s5 = ssub.s32 1, %s3
  %s6 = scalar_select 0, %s5, %s3
  $region1: #{tpu_custom_call.1} parent=0
    #allocation2 [shape = 'u8[8192]{0}', space=vmem, size = 0x2000, scoped, tag = 'input window, operand 0']
    #allocation3 [shape = 's32[2]{0}', space=sflag, size = 0x8, scoped, tag = 'scoped memory for tpu_custom_call.1']
    #allocation4 [shape = 's32[2]{0}', space=sflag, size = 0x8, scoped, tag = 'scoped memory for tpu_custom_call.1']
    #allocation5 [shape = 'u8[4096]{0}', space=vmem, size = 0x1000, scoped, tag = 'input window, operand 1, single buffered']
    #allocation6 [shape = 's32[1]{0}', space=sflag, size = 0x4, scoped, tag = 'scoped memory for tpu_custom_call.1']
    #allocation7 [shape = 'u8[8192]{0}', space=vmem, size = 0x2000, scoped, tag = 'output window, operand 0']
    %7 = vsyncpa [#allocation3], 0
    %s8 = scalar_lea.sflag [#allocation3], 1
    %9 = vsyncpa %s8, 0
    %10 = vsyncpa [#allocation6], 0
    %11 = vsyncpa [#allocation4], 0
    %s12 = scalar_lea.sflag [#allocation4], 1
    %13 = vsyncpa %s12, 0
    loop: start=0, step=1, limit=4
    $region2: #{tpu_custom_call.1} parent=1 // loop_pre_header
      _
    $region3: #{tpu_custom_call.1} parent=1 // loop_header
      %s15 = sphi 0, %s19
      %p16 = scmp.ge.s32.totalorder %s15, 4
      %s25 = sphi 0, %s27
      %s28 = sphi 0, %s25
      %s29 = sphi 0, %s28
      %s45 = sphi 0, %s29
      %s49 = sphi 0, %s49
      %s51 = sphi 0, %s49
      %s52 = sphi 0, %s51
      %s66 = sphi 0, %s52
      %s72 = sphi 0, %s74
      %s75 = sphi 0, %s72
      %s76 = sphi 0, %s75
      %s92 = sphi 0, %s76
    $region4: #{tpu_custom_call.1} parent=1 // loop_header_branch
      %18 = sbr.rel (%p16) target = $region8
    $region5: #{tpu_custom_call.1} parent=1 // loop_body
      %s20 = ssub.s32 %s15, 1
      %s21 = ssub.s32 %s15, 2
      %s22 = sadd.s32 %s15, 1
      %s23 = ssub.s32 %s15, %s22
      %p24 = scmp.eq.s32.totalorder %s23, 0
      %s26 = sadd.s32 %s25, 1
      %s27 = scalar_select %p24, %s25, %s26
      %p30 = pneg %p24
      %p31 = scmp.eq.s32.totalorder %s15, 1
      %p32 = por %p30, %p31
      %p33 = scmp.ne.s32.totalorder %s25, %s28
      %p34 = scmp.eq.s32.totalorder %s15, 0
      %p35 = por %p33, %p34
      %p36 = scmp.ne.s32.totalorder %s25, %s28
      %p37 = scmp.eq.s32.totalorder %s20, 1
      %p38 = por %p36, %p37
      %p39 = scmp.ne.s32.totalorder %s28, %s29
      %p40 = scmp.eq.s32.totalorder %s20, 0
      %p41 = por %p39, %p40
      %p42 = scmp.ne.s32.totalorder %s28, %s29
      %p43 = scmp.eq.s32.totalorder %s21, 1
      %p44 = por %p42, %p43
      %p46 = scmp.ne.s32.totalorder %s29, %s45
      %p47 = scmp.eq.s32.totalorder %s21, 0
      %p48 = por %p46, %p47
      %s50 = sadd.s32 %s49, 1
      %p53 = scmp.eq.s32.totalorder %s15, 1
      %p54 = scmp.ne.s32.totalorder %s49, %s51
      %p55 = scmp.eq.s32.totalorder %s15, 0
      %p56 = por %p54, %p55
      %p57 = scmp.ne.s32.totalorder %s49, %s51
      %p58 = scmp.eq.s32.totalorder %s20, 1
      %p59 = por %p57, %p58
      %p60 = scmp.ne.s32.totalorder %s51, %s52
      %p61 = scmp.eq.s32.totalorder %s20, 0
      %p62 = por %p60, %p61
      %p63 = scmp.ne.s32.totalorder %s51, %s52
      %p64 = scmp.eq.s32.totalorder %s21, 1
      %p65 = por %p63, %p64
      %p67 = scmp.ne.s32.totalorder %s52, %s66
      %p68 = scmp.eq.s32.totalorder %s21, 0
      %p69 = por %p67, %p68
      %s70 = ssub.s32 %s15, %s22
      %p71 = scmp.eq.s32.totalorder %s70, 0
      %s73 = sadd.s32 %s72, 1
      %s74 = scalar_select %p71, %s72, %s73
      %p77 = pneg %p71
      %p78 = scmp.eq.s32.totalorder %s15, 1
      %p79 = por %p77, %p78
      %p80 = scmp.ne.s32.totalorder %s72, %s75
      %p81 = scmp.eq.s32.totalorder %s15, 0
      %p82 = por %p80, %p81
      %p83 = scmp.ne.s32.totalorder %s72, %s75
      %p84 = scmp.eq.s32.totalorder %s20, 1
      %p85 = por %p83, %p84
      %p86 = scmp.ne.s32.totalorder %s75, %s76
      %p87 = scmp.eq.s32.totalorder %s20, 0
      %p88 = por %p86, %p87
      %p89 = scmp.ne.s32.totalorder %s75, %s76
      %p90 = scmp.eq.s32.totalorder %s21, 1
      %p91 = por %p89, %p90
      %p93 = scmp.ne.s32.totalorder %s76, %s92
      %p94 = scmp.eq.s32.totalorder %s21, 0
      %p95 = por %p93, %p94
      %p96 = scmp.le.s32.totalorder 1, %s15
      %p97 = scmp.lt.s32.totalorder %s15, 3
      %p98 = pnand %p96, %p97
      %p99 = pneg %p98
      // Predicated region
      $region9: #{tpu_custom_call.1} parent=5 // pred_check
        _
      $region10: #{tpu_custom_call.1} parent=5 // pred_check_branch
        %101 = sbr.rel (%p98) target = $region12
      $region11: #{tpu_custom_call.1} parent=5 // pred_region
        %s102 = ssub.s32 %s15, 1
        // Predicated region
        $region13: #{tpu_custom_call.1} parent=11 // pred_check
          %p103 = pneg %p62
        $region14: #{tpu_custom_call.1} parent=11 // pred_check_branch
          %105 = sbr.rel (%p103) target = $region16
        $region15: #{tpu_custom_call.1} parent=11 // pred_region
          %s107 = ssub.s32 128, 128
          %108 = vsyncadd [#allocation6], %s107
          %s110 = sshll.u32 [#allocation5], 4
          %s111 = int_to_ptr.vmem [resolvable:$true] %s110
          %113 = dma.hbm_to_vmem [thread:$0]  %s1, 128, %s111, [#allocation6]
        $region16: #{tpu_custom_call.1} parent=11 // pred_fallthru
          _
      $region12: #{tpu_custom_call.1} parent=5 // pred_fallthru
        _
      %p114 = scmp.lt.s32.totalorder %s15, 2
      // Predicated region
      $region17: #{tpu_custom_call.1} parent=5 // pred_check
        %p115 = pneg %p114
      $region18: #{tpu_custom_call.1} parent=5 // pred_check_branch
        %117 = sbr.rel (%p115) target = $region20
      $region19: #{tpu_custom_call.1} parent=5 // pred_region
        // Predicated region
        $region21: #{tpu_custom_call.1} parent=19 // pred_check
          %p118 = pneg %p35
        $region22: #{tpu_custom_call.1} parent=19 // pred_check_branch
          %120 = sbr.rel (%p118) target = $region24
        $region23: #{tpu_custom_call.1} parent=19 // pred_region
          %s121 = sand.u32 %s25, 1
          %s122 = scalar_lea.sflag [#allocation3], %s121
          %s123 = sand.u32 %s25, 1
          %s124 = smul.addr %s123, 8
          %s125 = scalar_lea.vmem [#allocation2], %s124
          %s127 = ssub.s32 128, 128
          %128 = vsyncadd %s122, %s127
          %s129 = smul.addr %s15, 128
          %s130 = scalar_lea.hbm %s0, %s129
          %s132 = sshll.u32 %s125, 4
          %s133 = int_to_ptr.vmem [resolvable:$true] %s132
          %135 = dma.hbm_to_vmem [thread:$0]  %s130, 128, %s133, %s122
        $region24: #{tpu_custom_call.1} parent=19 // pred_fallthru
          _
      $region20: #{tpu_custom_call.1} parent=5 // pred_fallthru
        _
      %p136 = scmp.le.s32.totalorder 1, %s15
      %p137 = scmp.lt.s32.totalorder %s15, 3
      %p138 = pnand %p136, %p137
      %p139 = pneg %p138
      // Predicated region
      $region25: #{tpu_custom_call.1} parent=5 // pred_check
        _
      $region26: #{tpu_custom_call.1} parent=5 // pred_check_branch
        %141 = sbr.rel (%p138) target = $region28
      $region27: #{tpu_custom_call.1} parent=5 // pred_region
        %s142 = ssub.s32 %s15, 1
        %s143 = sand.u32 %s28, 1
        %s144 = scalar_lea.sflag [#allocation3], %s143
        %s145 = sand.u32 %s28, 1
        %s146 = smul.addr %s145, 8
        %s147 = scalar_lea.vmem [#allocation2], %s146
        // Predicated region
        $region29: #{tpu_custom_call.1} parent=27 // pred_check
          %p148 = pneg %p41
        $region30: #{tpu_custom_call.1} parent=27 // pred_check_branch
          %150 = sbr.rel (%p148) target = $region32
        $region31: #{tpu_custom_call.1} parent=27 // pred_region
          %151 = dma.done %s144, 128
        $region32: #{tpu_custom_call.1} parent=27 // pred_fallthru
          _
        // Predicated region
        $region33: #{tpu_custom_call.1} parent=27 // pred_check
          %p152 = pneg %p62
        $region34: #{tpu_custom_call.1} parent=27 // pred_check_branch
          %154 = sbr.rel (%p152) target = $region36
        $region35: #{tpu_custom_call.1} parent=27 // pred_region
          %155 = dma.done [#allocation6], 128
        $region36: #{tpu_custom_call.1} parent=27 // pred_fallthru
          _
        %s156 = sand.u32 %s28, 1
        %s157 = scalar_lea.sflag [#allocation3], %s156
        %s158 = sand.u32 %s28, 1
        %s159 = smul.addr %s158, 8
        %s160 = scalar_lea.vmem [#allocation2], %s159
        %p161 = pneg %p41
        %p162 = pneg %p38
        %p163 = pneg %p62
        %p164 = pneg %p59
        %p165 = pneg %p88
        %p166 = pneg %p85
        %s167 = sand.u32 %s75, 1
        %s168 = scalar_lea.sflag [#allocation4], %s167
        %s169 = sand.u32 %s75, 1
        %s170 = smul.addr %s169, 8
        %s171 = scalar_lea.vmem [#allocation7], %s170
        %v172 = vld [vmem:[%s147] sm:$0xff]
        %v173 = vld [vmem:[#allocation5] sm:$0xff]
        %v174 = vadd.f32 %v172, %v173
        %175 = vst [vmem:[%s171] sm:$0xff] %v174
        %s176 = sand.u32 %s75, 1
        %s177 = scalar_lea.sflag [#allocation4], %s176
        %s178 = sand.u32 %s75, 1
        %s179 = smul.addr %s178, 8
        %s180 = scalar_lea.vmem [#allocation7], %s179
        // Predicated region
        $region37: #{tpu_custom_call.1} parent=27 // pred_check
          %p181 = pneg %p85
        $region38: #{tpu_custom_call.1} parent=27 // pred_check_branch
          %183 = sbr.rel (%p181) target = $region40
        $region39: #{tpu_custom_call.1} parent=27 // pred_region
          %s185 = ssub.s32 128, 128
          %186 = vsyncadd %s177, %s185
          %s187 = smul.addr %s20, 128
          %s188 = scalar_lea.hbm %s2, %s187
          %s190 = sshll.u32 %s180, 4
          %s191 = int_to_ptr.vmem [resolvable:$true] %s190
          %193 = dma.vmem_to_hbm [thread:$0]  %s191, 128, %s188, %s177
        $region40: #{tpu_custom_call.1} parent=27 // pred_fallthru
          _
      $region28: #{tpu_custom_call.1} parent=5 // pred_fallthru
        _
      %p194 = scmp.le.s32.totalorder 2, %s15
      // Predicated region
      $region41: #{tpu_custom_call.1} parent=5 // pred_check
        %p195 = pneg %p194
      $region42: #{tpu_custom_call.1} parent=5 // pred_check_branch
        %197 = sbr.rel (%p195) target = $region44
      $region43: #{tpu_custom_call.1} parent=5 // pred_region
        %s198 = ssub.s32 %s15, 2
        // Predicated region
        $region45: #{tpu_custom_call.1} parent=43 // pred_check
          %p199 = pneg %p91
        $region46: #{tpu_custom_call.1} parent=43 // pred_check_branch
          %201 = sbr.rel (%p199) target = $region48
        $region47: #{tpu_custom_call.1} parent=43 // pred_region
          %s202 = sand.u32 %s76, 1
          %s203 = scalar_lea.sflag [#allocation4], %s202
          %s204 = sand.u32 %s76, 1
          %s205 = smul.addr %s204, 8
          %s206 = scalar_lea.vmem [#allocation7], %s205
          %207 = dma.done %s203, 128
        $region48: #{tpu_custom_call.1} parent=43 // pred_fallthru
          _
      $region44: #{tpu_custom_call.1} parent=5 // pred_fallthru
        _
    $region6: #{tpu_custom_call.1} parent=1 // loop_footer
      %s19 = sadd.s32 1, %s15
    $region7: #{tpu_custom_call.1} parent=1 // loop_footer_branch
      %14 = sbr.rel target = $region3
    $region8: #{tpu_custom_call.1} parent=1 // loop_exit
      _
    %208 = vsyncpa [#allocation3], 1
    %s209 = scalar_lea.sflag [#allocation3], 1
    %210 = vsyncpa %s209, 1
    %211 = vsyncpa [#allocation6], 1
    %212 = vsyncpa [#allocation4], 1
    %s213 = scalar_lea.sflag [#allocation4], 1
    %214 = vsyncpa %s213, 1

// kernel: tpu_custom_call.1
$region0: #{tpu_custom_call.1}
  #allocation0 [shape = 'u32[]', space=smem, size = 0x4, offset = 0x4, fixed_abs, tag = 'smem constant byte address 0x4 - core index']
  #allocation1 [shape = 'u32[144,128]{1,0:T(1,128)}', space=vmem, size = 0x12000, scoped, tag = 'internal scratch']
  %s0 = inlined_call_operand.hbm [shape: f32[16,128], index: 0, kind: input, shape index: {}]
  %s1 = inlined_call_operand.hbm [shape: f32[128,128], index: 1, kind: input, shape index: {}]
  %s2 = inlined_call_operand.vmem [shape: f32[1,128], index: 2, kind: input, shape index: {}]
  %s3 = inlined_call_operand.hbm [shape: f32[128,128], index: 3, kind: input, shape index: {}]
  %s4 = inlined_call_operand.vmem [shape: f32[1,128], index: 4, kind: input, shape index: {}]
  %s5 = inlined_call_operand.hbm [shape: f32[128,128], index: 5, kind: input, shape index: {}]
  %s6 = inlined_call_operand.hbm [shape: f32[16,128], index: 6, kind: output, shape index: {}]
  %s7 = sld [smem:[#allocation0]]
  $region50: #{tpu_custom_call.1} parent=0
    _
  %s9 = ssub.s32 1, %s7
  %s10 = scalar_select 0, %s9, %s7
  $region1: #{tpu_custom_call.1} parent=0
    #allocation2 [shape = 'u8[8192]{0}', space=vmem, size = 0x2000, scoped, tag = 'input window, operand 0, single buffered']
    #allocation3 [shape = 's32[1]{0}', space=sflag, size = 0x4, scoped, tag = 'scoped memory for tpu_custom_call.1']
    #allocation4 [shape = 's32[1]{0}', space=sflag, size = 0x4, scoped, tag = 'scoped memory for tpu_custom_call.1']
    #allocation5 [shape = 'u8[65536]{0}', space=vmem, size = 0x10000, scoped, tag = 'input window, operand 1, single buffered']
    #allocation6 [shape = 's32[1]{0}', space=sflag, size = 0x4, scoped, tag = 'scoped memory for tpu_custom_call.1']
    #allocation7 [shape = 'u8[65536]{0}', space=vmem, size = 0x10000, scoped, tag = 'input window, operand 3, single buffered']
    #allocation8 [shape = 'u8[65536]{0}', space=vmem, size = 0x10000, scoped, tag = 'input window, operand 5, single buffered']
    #allocation9 [shape = 's32[1]{0}', space=sflag, size = 0x4, scoped, tag = 'scoped memory for tpu_custom_call.1']
    #allocation10 [shape = 'u8[8192]{0}', space=vmem, size = 0x2000, scoped, tag = 'output window, operand 0, single buffered']
    %11 = vsyncpa [#allocation3], 0
    %12 = vsyncpa [#allocation6], 0
    %13 = vsyncpa [#allocation9], 0
    %14 = vsyncpa [#allocation4], 0
    // Predicated region
    $region2: #{tpu_custom_call.1} parent=1 // pred_check
      _
    $region3: #{tpu_custom_call.1} parent=1 // pred_check_branch
      %16 = sbr.rel (0) target = $region5
    $region4: #{tpu_custom_call.1} parent=1 // pred_region
      %s18 = ssub.s32 256, 256
      %19 = vsyncadd [#allocation3], %s18
      %s20 = sshll.u32 [#allocation2], 4
      %s21 = int_to_ptr.vmem [resolvable:$true] %s20
      %26 = dma.hbm_to_vmem [thread:$0]  %s0, 256, %s21, [#allocation3], 128, 128, 8
    $region5: #{tpu_custom_call.1} parent=1 // pred_fallthru
      _
    // Predicated region
    $region6: #{tpu_custom_call.1} parent=1 // pred_check
      _
    $region7: #{tpu_custom_call.1} parent=1 // pred_check_branch
      %28 = sbr.rel (0) target = $region9
    $region8: #{tpu_custom_call.1} parent=1 // pred_region
      %s30 = ssub.s32 2048, 2048
      %31 = vsyncadd [#allocation6], %s30
      %s32 = sshll.u32 [#allocation5], 4
      %s33 = int_to_ptr.vmem [resolvable:$true] %s32
      %38 = dma.hbm_to_vmem [thread:$0]  %s1, 2048, %s33, [#allocation6], 128, 128, 8
    $region9: #{tpu_custom_call.1} parent=1 // pred_fallthru
      _
    // Predicated region
    $region10: #{tpu_custom_call.1} parent=1 // pred_check
      _
    $region11: #{tpu_custom_call.1} parent=1 // pred_check_branch
      %40 = sbr.rel (0) target = $region13
    $region12: #{tpu_custom_call.1} parent=1 // pred_region
      _
    $region13: #{tpu_custom_call.1} parent=1 // pred_fallthru
      _
    // Predicated region
    $region14: #{tpu_custom_call.1} parent=1 // pred_check
      _
    $region15: #{tpu_custom_call.1} parent=1 // pred_check_branch
      %42 = sbr.rel (0) target = $region17
    $region16: #{tpu_custom_call.1} parent=1 // pred_region
      %s44 = ssub.s32 2048, 2048
      %45 = vsyncadd [#allocation6], %s44
      %s46 = sshll.u32 [#allocation7], 4
      %s47 = int_to_ptr.vmem [resolvable:$true] %s46
      %52 = dma.hbm_to_vmem [thread:$0]  %s3, 2048, %s47, [#allocation6], 128, 128, 8
    $region17: #{tpu_custom_call.1} parent=1 // pred_fallthru
      _
    // Predicated region
    $region18: #{tpu_custom_call.1} parent=1 // pred_check
      _
    $region19: #{tpu_custom_call.1} parent=1 // pred_check_branch
      %54 = sbr.rel (0) target = $region21
    $region20: #{tpu_custom_call.1} parent=1 // pred_region
      _
    $region21: #{tpu_custom_call.1} parent=1 // pred_fallthru
      _
    // Predicated region
    $region22: #{tpu_custom_call.1} parent=1 // pred_check
      _
    $region23: #{tpu_custom_call.1} parent=1 // pred_check_branch
      %56 = sbr.rel (0) target = $region25
    $region24: #{tpu_custom_call.1} parent=1 // pred_region
      %s58 = ssub.s32 2048, 2048
      %59 = vsyncadd [#allocation9], %s58
      %s60 = sshll.u32 [#allocation8], 4
      %s61 = int_to_ptr.vmem [resolvable:$true] %s60
      %66 = dma.hbm_to_vmem [thread:$0]  %s5, 2048, %s61, [#allocation9], 128, 128, 8
    $region25: #{tpu_custom_call.1} parent=1 // pred_fallthru
      _
    // Predicated region
    $region26: #{tpu_custom_call.1} parent=1 // pred_check
      _
    $region27: #{tpu_custom_call.1} parent=1 // pred_check_branch
      %68 = sbr.rel (0) target = $region29
    $region28: #{tpu_custom_call.1} parent=1 // pred_region
      %69 = dma.done [#allocation3], 256
    $region29: #{tpu_custom_call.1} parent=1 // pred_fallthru
      _
    // Predicated region
    $region30: #{tpu_custom_call.1} parent=1 // pred_check
      _
    $region31: #{tpu_custom_call.1} parent=1 // pred_check_branch
      %71 = sbr.rel (0) target = $region33
    $region32: #{tpu_custom_call.1} parent=1 // pred_region
      %72 = dma.done [#allocation6], 2048
    $region33: #{tpu_custom_call.1} parent=1 // pred_fallthru
      _
    // Predicated region
    $region34: #{tpu_custom_call.1} parent=1 // pred_check
      _
    $region35: #{tpu_custom_call.1} parent=1 // pred_check_branch
      %74 = sbr.rel (0) target = $region37
    $region36: #{tpu_custom_call.1} parent=1 // pred_region
      %75 = dma.done [#allocation6], 2048
    $region37: #{tpu_custom_call.1} parent=1 // pred_fallthru
      _
    // Predicated region
    $region38: #{tpu_custom_call.1} parent=1 // pred_check
      _
    $region39: #{tpu_custom_call.1} parent=1 // pred_check_branch
      %77 = sbr.rel (0) target = $region41
    $region40: #{tpu_custom_call.1} parent=1 // pred_region
      %78 = dma.done [#allocation9], 2048
    $region41: #{tpu_custom_call.1} parent=1 // pred_fallthru
      _
    %v79 = vld [vmem:[#allocation2] sm:$0xff]
    %v80 = vld [vmem:[#allocation2 + $0x8] sm:$0xff]
    %v81 = vld [vmem:[#allocation5] sm:$0xff]
    %v82 = vld [vmem:[#allocation5 + $0x8] sm:$0xff]
    %v83 = vld [vmem:[#allocation5 + $0x10] sm:$0xff]
    %v84 = vld [vmem:[#allocation5 + $0x18] sm:$0xff]
    %v85 = vld [vmem:[#allocation5 + $0x20] sm:$0xff]
    %v86 = vld [vmem:[#allocation5 + $0x28] sm:$0xff]
    %v87 = vld [vmem:[#allocation5 + $0x30] sm:$0xff]
    %v88 = vld [vmem:[#allocation5 + $0x38] sm:$0xff]
    %v89 = vld [vmem:[#allocation5 + $0x40] sm:$0xff]
    %v90 = vld [vmem:[#allocation5 + $0x48] sm:$0xff]
    %v91 = vld [vmem:[#allocation5 + $0x50] sm:$0xff]
    %v92 = vld [vmem:[#allocation5 + $0x58] sm:$0xff]
    %v93 = vld [vmem:[#allocation5 + $0x60] sm:$0xff]
    %v94 = vld [vmem:[#allocation5 + $0x68] sm:$0xff]
    %v95 = vld [vmem:[#allocation5 + $0x70] sm:$0xff]
    %v96 = vld [vmem:[#allocation5 + $0x78] sm:$0xff]
    %v97 = vld [vmem:[%s2] sm:$0x1]
    %v99 = vlaneseq
    %v100 = vshrl.u32 %v99, 7
    %v101 = vsub.s32 0, %v100
    %v102 = vrot.slane %v97, %v101
    %104 = vmatprep.subr.mxu0 0.0
    %105 = vmatpush1.msra.mxu0 %v96
    %106 = vmatprep.subr.mxu0 0.0
    %107 = vmatpush1.msra.mxu0 %v95
    %108 = vmatprep.subr.mxu0 0.0
    %109 = vmatpush1.msra.mxu0 %v94
    %110 = vmatprep.subr.mxu0 0.0
    %111 = vmatpush1.msra.mxu0 %v93
    %112 = vmatprep.subr.mxu0 0.0
    %113 = vmatpush1.msra.mxu0 %v92
    %114 = vmatprep.subr.mxu0 0.0
    %115 = vmatpush1.msra.mxu0 %v91
    %116 = vmatprep.subr.mxu0 0.0
    %117 = vmatpush1.msra.mxu0 %v90
    %118 = vmatprep.subr.mxu0 0.0
    %119 = vmatpush1.msra.mxu0 %v89
    %120 = vmatprep.subr.mxu0 0.0
    %121 = vmatpush1.msra.mxu0 %v88
    %122 = vmatprep.subr.mxu0 0.0
    %123 = vmatpush1.msra.mxu0 %v87
    %124 = vmatprep.subr.mxu0 0.0
    %125 = vmatpush1.msra.mxu0 %v86
    %126 = vmatprep.subr.mxu0 0.0
    %127 = vmatpush1.msra.mxu0 %v85
    %128 = vmatprep.subr.mxu0 0.0
    %129 = vmatpush1.msra.mxu0 %v84
    %130 = vmatprep.subr.mxu0 0.0
    %131 = vmatpush1.msra.mxu0 %v83
    %132 = vmatprep.subr.mxu0 0.0
    %133 = vmatpush1.msra.mxu0 %v82
    %134 = vmatprep.subr.mxu0 0.0
    %135 = vmatpush1.msra.mxu0 %v81
    %136 = vmatprep.subr.mxu0 0.0
    %137 = vmatpush2.msra.mxu0 0.0
    %138 = vmatprep.subr.mxu0 0.0
    %139 = vmatpush2.msra.mxu0 0.0
    %140 = vmatprep.subr.mxu0 0.0
    %141 = vmatpush2.msra.mxu0 0.0
    %142 = vmatprep.subr.mxu0 0.0
    %143 = vmatpush2.msra.mxu0 0.0
    %144 = vmatprep.subr.mxu0 0.0
    %145 = vmatpush2.msra.mxu0 0.0
    %146 = vmatprep.subr.mxu0 0.0
    %147 = vmatpush2.msra.mxu0 0.0
    %148 = vmatprep.subr.mxu0 0.0
    %149 = vmatpush2.msra.mxu0 0.0
    %150 = vmatprep.subr.mxu0 0.0
    %151 = vmatpush2.msra.mxu0 0.0
    %152 = vmatprep.subr.mxu0 0.0
    %153 = vmatpush2.msra.mxu0 0.0
    %154 = vmatprep.subr.mxu0 0.0
    %155 = vmatpush2.msra.mxu0 0.0
    %156 = vmatprep.subr.mxu0 0.0
    %157 = vmatpush2.msra.mxu0 0.0
    %158 = vmatprep.subr.mxu0 0.0
    %159 = vmatpush2.msra.mxu0 0.0
    %160 = vmatprep.subr.mxu0 0.0
    %161 = vmatpush2.msra.mxu0 0.0
    %162 = vmatprep.subr.mxu0 0.0
    %163 = vmatpush2.msra.mxu0 0.0
    %164 = vmatprep.subr.mxu0 0.0
    %165 = vmatpush2.msra.mxu0 0.0
    %166 = vmatprep.subr.mxu0 0.0
    %167 = vmatpush2.msra.mxu0 0.0
    %168 = vmatprep.mubr.f32.mxu0 0.0
    %169 = vmatmul.mubr.f32.gmra.mxu0 %v79
    %v170 = vpop.f32.mrf.mxu0
    %v171 = vadd.f32 %v102, %v170
    %v172 = vpop.f32.mrf.mxu0
    %173 = vmatprep.mubr.f32.mxu0 0.0
    %174 = vmatmul.mubr.f32.gmra.mxu0 %v80
    %v175 = vpop.f32.mrf.mxu0
    %v176 = vadd.f32 %v102, %v175
    %v177 = vpop.f32.mrf.mxu0
    %178 = vdwg.mxu0
    %v179 = vmax.f32 %v171, 0.0
    %v180 = vmax.f32 %v176, 0.0
    %v181 = vld [vmem:[#allocation7] sm:$0xff]
    %v182 = vld [vmem:[#allocation7 + $0x8] sm:$0xff]
    %v183 = vld [vmem:[#allocation7 + $0x10] sm:$0xff]
    %v184 = vld [vmem:[#allocation7 + $0x18] sm:$0xff]
    %v185 = vld [vmem:[#allocation7 + $0x20] sm:$0xff]
    %v186 = vld [vmem:[#allocation7 + $0x28] sm:$0xff]
    %v187 = vld [vmem:[#allocation7 + $0x30] sm:$0xff]
    %v188 = vld [vmem:[#allocation7 + $0x38] sm:$0xff]
    %v189 = vld [vmem:[#allocation7 + $0x40] sm:$0xff]
    %v190 = vld [vmem:[#allocation7 + $0x48] sm:$0xff]
    %v191 = vld [vmem:[#allocation7 + $0x50] sm:$0xff]
    %v192 = vld [vmem:[#allocation7 + $0x58] sm:$0xff]
    %v193 = vld [vmem:[#allocation7 + $0x60] sm:$0xff]
    %v194 = vld [vmem:[#allocation7 + $0x68] sm:$0xff]
    %v195 = vld [vmem:[#allocation7 + $0x70] sm:$0xff]
    %v196 = vld [vmem:[#allocation7 + $0x78] sm:$0xff]
    %v197 = vld [vmem:[%s4] sm:$0x1]
    %v199 = vlaneseq
    %v200 = vshrl.u32 %v199, 7
    %v201 = vsub.s32 0, %v200
    %v202 = vrot.slane %v197, %v201
    %204 = vmatprep.subr.mxu0 0.0
    %205 = vmatpush1.msra.mxu0 %v196
    %206 = vmatprep.subr.mxu0 0.0
    %207 = vmatpush1.msra.mxu0 %v195
    %208 = vmatprep.subr.mxu0 0.0
    %209 = vmatpush1.msra.mxu0 %v194
    %210 = vmatprep.subr.mxu0 0.0
    %211 = vmatpush1.msra.mxu0 %v193
    %212 = vmatprep.subr.mxu0 0.0
    %213 = vmatpush1.msra.mxu0 %v192
    %214 = vmatprep.subr.mxu0 0.0
    %215 = vmatpush1.msra.mxu0 %v191
    %216 = vmatprep.subr.mxu0 0.0
    %217 = vmatpush1.msra.mxu0 %v190
    %218 = vmatprep.subr.mxu0 0.0
    %219 = vmatpush1.msra.mxu0 %v189
    %220 = vmatprep.subr.mxu0 0.0
    %221 = vmatpush1.msra.mxu0 %v188
    %222 = vmatprep.subr.mxu0 0.0
    %223 = vmatpush1.msra.mxu0 %v187
    %224 = vmatprep.subr.mxu0 0.0
    %225 = vmatpush1.msra.mxu0 %v186
    %226 = vmatprep.subr.mxu0 0.0
    %227 = vmatpush1.msra.mxu0 %v185
    %228 = vmatprep.subr.mxu0 0.0
    %229 = vmatpush1.msra.mxu0 %v184
    %230 = vmatprep.subr.mxu0 0.0
    %231 = vmatpush1.msra.mxu0 %v183
    %232 = vmatprep.subr.mxu0 0.0
    %233 = vmatpush1.msra.mxu0 %v182
    %234 = vmatprep.subr.mxu0 0.0
    %235 = vmatpush1.msra.mxu0 %v181
    %236 = vmatprep.subr.mxu0 0.0
    %237 = vmatpush2.msra.mxu0 0.0
    %238 = vmatprep.subr.mxu0 0.0
    %239 = vmatpush2.msra.mxu0 0.0
    %240 = vmatprep.subr.mxu0 0.0
    %241 = vmatpush2.msra.mxu0 0.0
    %242 = vmatprep.subr.mxu0 0.0
    %243 = vmatpush2.msra.mxu0 0.0
    %244 = vmatprep.subr.mxu0 0.0
    %245 = vmatpush2.msra.mxu0 0.0
    %246 = vmatprep.subr.mxu0 0.0
    %247 = vmatpush2.msra.mxu0 0.0
    %248 = vmatprep.subr.mxu0 0.0
    %249 = vmatpush2.msra.mxu0 0.0
    %250 = vmatprep.subr.mxu0 0.0
    %251 = vmatpush2.msra.mxu0 0.0
    %252 = vmatprep.subr.mxu0 0.0
    %253 = vmatpush2.msra.mxu0 0.0
    %254 = vmatprep.subr.mxu0 0.0
    %255 = vmatpush2.msra.mxu0 0.0
    %256 = vmatprep.subr.mxu0 0.0
    %257 = vmatpush2.msra.mxu0 0.0
    %258 = vmatprep.subr.mxu0 0.0
    %259 = vmatpush2.msra.mxu0 0.0
    %260 = vmatprep.subr.mxu0 0.0
    %261 = vmatpush2.msra.mxu0 0.0
    %262 = vmatprep.subr.mxu0 0.0
    %263 = vmatpush2.msra.mxu0 0.0
    %264 = vmatprep.subr.mxu0 0.0
    %265 = vmatpush2.msra.mxu0 0.0
    %266 = vmatprep.subr.mxu0 0.0
    %267 = vmatpush2.msra.mxu0 0.0
    %268 = vmatprep.mubr.f32.mxu0 0.0
    %269 = vmatmul.mubr.f32.gmra.mxu0 %v179
    %v270 = vpop.f32.mrf.mxu0
    %v271 = vadd.f32 %v202, %v270
    %v272 = vpop.f32.mrf.mxu0
    %273 = vmatprep.mubr.f32.mxu0 0.0
    %274 = vmatmul.mubr.f32.gmra.mxu0 %v180
    %v275 = vpop.f32.mrf.mxu0
    %v276 = vadd.f32 %v202, %v275
    %v277 = vpop.f32.mrf.mxu0
    %278 = vdwg.mxu0
    %v279 = vmax.f32 %v271, 0.0
    %v280 = vmax.f32 %v276, 0.0
    %v281 = vld [vmem:[#allocation8] sm:$0xff]
    %v282 = vld [vmem:[#allocation8 + $0x8] sm:$0xff]
    %v283 = vld [vmem:[#allocation8 + $0x10] sm:$0xff]
    %v284 = vld [vmem:[#allocation8 + $0x18] sm:$0xff]
    %v285 = vld [vmem:[#allocation8 + $0x20] sm:$0xff]
    %v286 = vld [vmem:[#allocation8 + $0x28] sm:$0xff]
    %v287 = vld [vmem:[#allocation8 + $0x30] sm:$0xff]
    %v288 = vld [vmem:[#allocation8 + $0x38] sm:$0xff]
    %v289 = vld [vmem:[#allocation8 + $0x40] sm:$0xff]
    %v290 = vld [vmem:[#allocation8 + $0x48] sm:$0xff]
    %v291 = vld [vmem:[#allocation8 + $0x50] sm:$0xff]
    %v292 = vld [vmem:[#allocation8 + $0x58] sm:$0xff]
    %v293 = vld [vmem:[#allocation8 + $0x60] sm:$0xff]
    %v294 = vld [vmem:[#allocation8 + $0x68] sm:$0xff]
    %v295 = vld [vmem:[#allocation8 + $0x70] sm:$0xff]
    %v296 = vld [vmem:[#allocation8 + $0x78] sm:$0xff]
    %297 = vmatprep.subr.mxu0 0.0
    %298 = vmatpush1.msra.mxu0 %v296
    %299 = vmatprep.subr.mxu0 0.0
    %300 = vmatpush1.msra.mxu0 %v295
    %301 = vmatprep.subr.mxu0 0.0
    %302 = vmatpush1.msra.mxu0 %v294
    %303 = vmatprep.subr.mxu0 0.0
    %304 = vmatpush1.msra.mxu0 %v293
    %305 = vmatprep.subr.mxu0 0.0
    %306 = vmatpush1.msra.mxu0 %v292
    %307 = vmatprep.subr.mxu0 0.0
    %308 = vmatpush1.msra.mxu0 %v291
    %309 = vmatprep.subr.mxu0 0.0
    %310 = vmatpush1.msra.mxu0 %v290
    %311 = vmatprep.subr.mxu0 0.0
    %312 = vmatpush1.msra.mxu0 %v289
    %313 = vmatprep.subr.mxu0 0.0
    %314 = vmatpush1.msra.mxu0 %v288
    %315 = vmatprep.subr.mxu0 0.0
    %316 = vmatpush1.msra.mxu0 %v287
    %317 = vmatprep.subr.mxu0 0.0
    %318 = vmatpush1.msra.mxu0 %v286
    %319 = vmatprep.subr.mxu0 0.0
    %320 = vmatpush1.msra.mxu0 %v285
    %321 = vmatprep.subr.mxu0 0.0
    %322 = vmatpush1.msra.mxu0 %v284
    %323 = vmatprep.subr.mxu0 0.0
    %324 = vmatpush1.msra.mxu0 %v283
    %325 = vmatprep.subr.mxu0 0.0
    %326 = vmatpush1.msra.mxu0 %v282
    %327 = vmatprep.subr.mxu0 0.0
    %328 = vmatpush1.msra.mxu0 %v281
    %329 = vmatprep.subr.mxu0 0.0
    %330 = vmatpush2.msra.mxu0 0.0
    %331 = vmatprep.subr.mxu0 0.0
    %332 = vmatpush2.msra.mxu0 0.0
    %333 = vmatprep.subr.mxu0 0.0
    %334 = vmatpush2.msra.mxu0 0.0
    %335 = vmatprep.subr.mxu0 0.0
    %336 = vmatpush2.msra.mxu0 0.0
    %337 = vmatprep.subr.mxu0 0.0
    %338 = vmatpush2.msra.mxu0 0.0
    %339 = vmatprep.subr.mxu0 0.0
    %340 = vmatpush2.msra.mxu0 0.0
    %341 = vmatprep.subr.mxu0 0.0
    %342 = vmatpush2.msra.mxu0 0.0
    %343 = vmatprep.subr.mxu0 0.0
    %344 = vmatpush2.msra.mxu0 0.0
    %345 = vmatprep.subr.mxu0 0.0
    %346 = vmatpush2.msra.mxu0 0.0
    %347 = vmatprep.subr.mxu0 0.0
    %348 = vmatpush2.msra.mxu0 0.0
    %349 = vmatprep.subr.mxu0 0.0
    %350 = vmatpush2.msra.mxu0 0.0
    %351 = vmatprep.subr.mxu0 0.0
    %352 = vmatpush2.msra.mxu0 0.0
    %353 = vmatprep.subr.mxu0 0.0
    %354 = vmatpush2.msra.mxu0 0.0
    %355 = vmatprep.subr.mxu0 0.0
    %356 = vmatpush2.msra.mxu0 0.0
    %357 = vmatprep.subr.mxu0 0.0
    %358 = vmatpush2.msra.mxu0 0.0
    %359 = vmatprep.subr.mxu0 0.0
    %360 = vmatpush2.msra.mxu0 0.0
    %361 = vmatprep.mubr.f32.mxu0 0.0
    %362 = vmatmul.mubr.f32.gmra.mxu0 %v279
    %v363 = vpop.f32.mrf.mxu0
    %v364 = vadd.f32 0.0, %v363
    %v365 = vpop.f32.mrf.mxu0
    %366 = vmatprep.mubr.f32.mxu0 0.0
    %367 = vmatmul.mubr.f32.gmra.mxu0 %v280
    %v368 = vpop.f32.mrf.mxu0
    %v369 = vadd.f32 0.0, %v368
    %v370 = vpop.f32.mrf.mxu0
    %371 = vdwg.mxu0
    %372 = vst [vmem:[#allocation10] sm:$0xff] %v364
    %373 = vst [vmem:[#allocation10 + $0x8] sm:$0xff] %v369
    // Predicated region
    $region42: #{tpu_custom_call.1} parent=1 // pred_check
      _
    $region43: #{tpu_custom_call.1} parent=1 // pred_check_branch
      %375 = sbr.rel (0) target = $region45
    $region44: #{tpu_custom_call.1} parent=1 // pred_region
      %s377 = ssub.s32 256, 256
      %378 = vsyncadd [#allocation4], %s377
      %s379 = sshll.u32 [#allocation10], 4
      %s380 = int_to_ptr.vmem [resolvable:$true] %s379
      %385 = dma.vmem_to_hbm [thread:$0]  %s380, 256, %s6, [#allocation4], 128, 128, 8
    $region45: #{tpu_custom_call.1} parent=1 // pred_fallthru
      _
    // Predicated region
    $region46: #{tpu_custom_call.1} parent=1 // pred_check
      _
    $region47: #{tpu_custom_call.1} parent=1 // pred_check_branch
      %387 = sbr.rel (0) target = $region49
    $region48: #{tpu_custom_call.1} parent=1 // pred_region
      %388 = dma.done [#allocation4], 256
    $region49: #{tpu_custom_call.1} parent=1 // pred_fallthru
      _
    %389 = vsyncpa [#allocation3], 1
    %390 = vsyncpa [#allocation6], 1
    %391 = vsyncpa [#allocation9], 1
    %392 = vsyncpa [#allocation4], 1

</llo_original>
